<compile_context>
chip_gen: v6e
topology: v6e:2x2x1
jax: 0.10.0
libtpu: 0.0.40
codegen_flags: <defaults>
</compile_context>

<pallas_src>
import functools

import jax
import jax.numpy as jnp
from jax.experimental import pallas as pl
from jax.experimental.pallas import tpu as pltpu


def _piecewise_lin_kernel(csum_ref, w_ref, x_ref, o_ref, *, n):
    """csum_ref, w_ref: (n+1,) f32 tables in SMEM; x_ref/o_ref: (block_rows, 128) VMEM tiles."""
    x = x_ref[...].astype(jnp.float32)
    y = jnp.float32(n) * x
    f = y - jnp.floor(y)                 # == y.frac() on the valid domain x >= 0

    def lookup(lo, hi):
        # Returns (csum[min(idx, n)], w[min(idx + 1, n)]) for idx = trunc(y) restricted to
        # [lo, hi], as a fully-unrolled binary select tree.  Each internal node issues ONE
        # compare shared by the two selects; leaves are scalar SMEM reads (broadcast once).
        if lo == hi:
            return csum_ref[lo], w_ref[min(lo + 1, n)]
        mid = (lo + hi + 1) // 2
        take_hi = y >= float(mid)        # == (trunc(y) >= mid) for integer mid >= 1, y >= 0
        hi_c, hi_w = lookup(mid, hi)
        lo_c, lo_w = lookup(lo, mid - 1)
        return jnp.where(take_hi, hi_c, lo_c), jnp.where(take_hi, hi_w, lo_w)

    c_val, w_val = lookup(0, n)          # n compares + 2n selects, fully unrolled
    o_ref[...] = (c_val + f * w_val).astype(o_ref.dtype)


def _tensorcores_per_device():
    """Best-effort TensorCore count for the local device (megacore chips report 2)."""
    try:
        kind = jax.devices()[0].device_kind.lower()
    except Exception:
        return 1
    single_tc = ("v5e", "v5 lite", "v5lite", "v6e", "v6 lite", "v6lite", "v2", "v3")
    if any(tag in kind for tag in single_tc):
        return 1
    return 2  # v7x (and v4/v5p) expose one device per chip with 2 TensorCores


def _choose_block_rows(rows, target, num_cores):
    """Row-tile choice: single block for tiny inputs; one big block on single-TC chips;
    >= 2 grid steps per TensorCore on megacore chips."""
    if rows <= 64:
        return rows                       # tiny: one full-array block, grid=(1,)
    if num_cores <= 1:
        if rows <= target:
            return rows                   # single-TC: one block, zero per-step overhead
        return max(8, (target // 8) * 8)
    # Megacore: keep >= 2 pipelined steps per core (balance + prologue-DMA overlap).
    cap = min(target, pl.cdiv(rows, 2 * num_cores))
    return max(8, (min(cap, rows) // 8) * 8)


def piecewise_lin(x, weight, *, n, target_block_rows=2048, lane=128):
    """Applies PiecewiseLin element-wise to x (any shape)."""
    # Tiny (n+1,)-sized parameter preprocessing in plain JAX (exactly as the reference).
    w_abs = jnp.abs(weight).astype(jnp.float32)
    w_norm = w_abs / jnp.sum(w_abs)
    csum = jnp.cumsum(w_norm)

    orig_shape = x.shape
    flat = x.reshape(-1)
    total = flat.shape[0]
    if total == 0:
        return x

    pad = (-total) % lane
    if pad:
        # Rare fallback (element count not a multiple of 128); typical NN shapes skip this copy.
        flat = jnp.pad(flat, (0, pad))
    x2d = flat.reshape(-1, lane)
    rows = x2d.shape[0]

    block_rows = _choose_block_rows(rows, target_block_rows, _tensorcores_per_device())
    grid = (pl.cdiv(rows, block_rows),)   # ragged last block handled by Pallas masking

    kernel = functools.partial(_piecewise_lin_kernel, n=n)
    out2d = pl.pallas_call(
        kernel,
        out_shape=jax.ShapeDtypeStruct((rows, lane), x.dtype),
        grid=grid,
        in_specs=[
            pl.BlockSpec(memory_space=pltpu.MemorySpace.SMEM),    # csum  (n+1,)
            pl.BlockSpec(memory_space=pltpu.MemorySpace.SMEM),    # w     (n+1,)
            pl.BlockSpec((block_rows, lane), lambda i: (i, 0)),   # x tile
        ],
        out_specs=pl.BlockSpec((block_rows, lane), lambda i: (i, 0)),
        compiler_params=pltpu.CompilerParams(
            dimension_semantics=("parallel",)),
    )(csum, w_norm, x2d)

    out_flat = out2d.reshape(-1)
    if pad:
        out_flat = out_flat[:total]
    return out_flat.reshape(orig_shape)


def _reference(x, weight, n):
    """Pure-JAX reference mirroring the PyTorch forward exactly."""
    w = jnp.abs(weight).astype(jnp.float32)
    w = w / jnp.sum(w)
    csum = jnp.cumsum(w)
    y = n * x.astype(jnp.float32)
    idx = y.astype(jnp.int32)
    f = y - idx.astype(jnp.float32)
    out = csum[jnp.minimum(idx, n)] + f * w[jnp.minimum(idx + 1, n)]
    return out.astype(x.dtype)


if __name__ == "__main__":
    n = 16  # as used in the counting module

    key = jax.random.PRNGKey(0)
    k_x, k_x3, k_w = jax.random.split(key, 3)

    # Deterministic parameter init matching the module __init__:
    # weight = ones(n + 1); weight[0] = 0
    weight = jnp.ones((n + 1,), dtype=jnp.float32).at[0].set(0.0)

    # Main case: module is applied to values in [0, 1] (attention weights), NCHW layout.
    x = jax.random.uniform(k_x, (2, 4, 16, 16), dtype=jnp.float32)
    out = jax.block_until_ready(piecewise_lin(x, weight, n=n))
    ref = _reference(x, weight, n)
    assert out.shape == x.shape and out.dtype == x.dtype
    assert jnp.allclose(out, ref, atol=1e-6, rtol=1e-6), "mismatch vs reference (main)"

    # Boundary / extrapolation cases: x == 0, x == 1.0 exactly, and x slightly > 1.
    x2 = jnp.concatenate([
        jnp.zeros((64,), jnp.float32),
        jnp.ones((64,), jnp.float32),
        jnp.full((128,), 1.03, jnp.float32),
        jnp.linspace(0.0, 1.0, 256).astype(jnp.float32),
    ])
    out2 = jax.block_until_ready(piecewise_lin(x2, weight, n=n))
    assert jnp.allclose(out2, _reference(x2, weight, n), atol=1e-6, rtol=1e-6), \
        "mismatch vs reference (boundary)"

    # Ragged / pad-fallback case with a non-trivial (trained-like) weight vector.
    weight_rand = jax.random.normal(k_w, (n + 1,), dtype=jnp.float32)
    x3 = jax.random.uniform(k_x3, (3, 5, 7, 11), dtype=jnp.float32)
    out3 = jax.block_until_ready(piecewise_lin(x3, weight_rand, n=n))
    assert out3.shape == x3.shape
    assert jnp.allclose(out3, _reference(x3, weight_rand, n), atol=1e-6, rtol=1e-6), \
        "mismatch vs reference (ragged / random weight)"

    # Larger multi-block case to exercise the tiled/megacore path.
    x4 = jax.random.uniform(jax.random.PRNGKey(2), (8, 8, 64, 64), dtype=jnp.float32)
    out4 = jax.block_until_ready(piecewise_lin(x4, weight, n=n))
    assert jnp.allclose(out4, _reference(x4, weight, n), atol=1e-6, rtol=1e-6), \
        "mismatch vs reference (large)"

    print("KERNEL_OK")
</pallas_src>

<mosaic_0001>
module attributes {stable_mosaic.version = 11 : i64} {
  func.func @_piecewise_lin_kernel(%arg0: i32, %arg1: memref<17xf32, #tpu.memory_space<smem>>, %arg2: memref<17xf32, #tpu.memory_space<smem>>, %arg3: memref<16x128xf32, #tpu.memory_space<vmem>>, %arg4: memref<16x128xf32, #tpu.memory_space<vmem>>) attributes {dimension_semantics = [#tpu.dimension_semantics<parallel>], iteration_bounds = array<i64: 1>, scalar_prefetch = 0 : i64, scratch_operands = 0 : i64, tpu.core_type = #tpu.core_type<tc>, window_params = [{transform_indices = @transform_0, window_bounds = array<i64: 17>}, {transform_indices = @transform_1, window_bounds = array<i64: 17>}, {transform_indices = @transform_2, window_bounds = array<i64: 16, 128>}, {transform_indices = @transform_3, window_bounds = array<i64: 16, 128>}]} {
    %c0 = arith.constant 0 : index
    %c0_0 = arith.constant 0 : index
    %0 = vector.load %arg3[%c0, %c0_0] : memref<16x128xf32, #tpu.memory_space<vmem>>, vector<16x128xf32>
    %cst = arith.constant 1.600000e+01 : f32
    %1 = vector.broadcast %cst : f32 to vector<16x128xf32>
    %2 = arith.mulf %1, %0 : vector<16x128xf32>
    %3 = math.floor %2 : vector<16x128xf32>
    %4 = arith.subf %2, %3 : vector<16x128xf32>
    %cst_1 = arith.constant 8.000000e+00 : f32
    %5 = vector.broadcast %cst_1 : f32 to vector<16x128xf32>
    %6 = arith.cmpf oge, %2, %5 : vector<16x128xf32>
    %cst_2 = arith.constant 1.200000e+01 : f32
    %7 = vector.broadcast %cst_2 : f32 to vector<16x128xf32>
    %8 = arith.cmpf oge, %2, %7 : vector<16x128xf32>
    %cst_3 = arith.constant 1.400000e+01 : f32
    %9 = vector.broadcast %cst_3 : f32 to vector<16x128xf32>
    %10 = arith.cmpf oge, %2, %9 : vector<16x128xf32>
    %cst_4 = arith.constant 1.500000e+01 : f32
    %11 = vector.broadcast %cst_4 : f32 to vector<16x128xf32>
    %12 = arith.cmpf oge, %2, %11 : vector<16x128xf32>
    %cst_5 = arith.constant 1.600000e+01 : f32
    %13 = vector.broadcast %cst_5 : f32 to vector<16x128xf32>
    %14 = arith.cmpf oge, %2, %13 : vector<16x128xf32>
    %c16 = arith.constant 16 : index
    %15 = memref.load %arg1[%c16] : memref<17xf32, #tpu.memory_space<smem>>
    %c16_6 = arith.constant 16 : index
    %16 = memref.load %arg2[%c16_6] : memref<17xf32, #tpu.memory_space<smem>>
    %c15 = arith.constant 15 : index
    %17 = memref.load %arg1[%c15] : memref<17xf32, #tpu.memory_space<smem>>
    %c16_7 = arith.constant 16 : index
    %18 = memref.load %arg2[%c16_7] : memref<17xf32, #tpu.memory_space<smem>>
    %19 = vector.broadcast %15 : f32 to vector<16x128xf32>
    %20 = vector.broadcast %17 : f32 to vector<16x128xf32>
    %21 = arith.select %14, %19, %20 : vector<16x128xi1>, vector<16x128xf32>
    %22 = vector.broadcast %16 : f32 to vector<16x128xf32>
    %23 = vector.broadcast %18 : f32 to vector<16x128xf32>
    %24 = arith.select %14, %22, %23 : vector<16x128xi1>, vector<16x128xf32>
    %c14 = arith.constant 14 : index
    %25 = memref.load %arg1[%c14] : memref<17xf32, #tpu.memory_space<smem>>
    %c15_8 = arith.constant 15 : index
    %26 = memref.load %arg2[%c15_8] : memref<17xf32, #tpu.memory_space<smem>>
    %27 = vector.broadcast %25 : f32 to vector<16x128xf32>
    %28 = arith.select %12, %21, %27 : vector<16x128xi1>, vector<16x128xf32>
    %29 = vector.broadcast %26 : f32 to vector<16x128xf32>
    %30 = arith.select %12, %24, %29 : vector<16x128xi1>, vector<16x128xf32>
    %cst_9 = arith.constant 1.300000e+01 : f32
    %31 = vector.broadcast %cst_9 : f32 to vector<16x128xf32>
    %32 = arith.cmpf oge, %2, %31 : vector<16x128xf32>
    %c13 = arith.constant 13 : index
    %33 = memref.load %arg1[%c13] : memref<17xf32, #tpu.memory_space<smem>>
    %c14_10 = arith.constant 14 : index
    %34 = memref.load %arg2[%c14_10] : memref<17xf32, #tpu.memory_space<smem>>
    %c12 = arith.constant 12 : index
    %35 = memref.load %arg1[%c12] : memref<17xf32, #tpu.memory_space<smem>>
    %c13_11 = arith.constant 13 : index
    %36 = memref.load %arg2[%c13_11] : memref<17xf32, #tpu.memory_space<smem>>
    %37 = vector.broadcast %33 : f32 to vector<16x128xf32>
    %38 = vector.broadcast %35 : f32 to vector<16x128xf32>
    %39 = arith.select %32, %37, %38 : vector<16x128xi1>, vector<16x128xf32>
    %40 = vector.broadcast %34 : f32 to vector<16x128xf32>
    %41 = vector.broadcast %36 : f32 to vector<16x128xf32>
    %42 = arith.select %32, %40, %41 : vector<16x128xi1>, vector<16x128xf32>
    %43 = arith.select %10, %28, %39 : vector<16x128xi1>, vector<16x128xf32>
    %44 = arith.select %10, %30, %42 : vector<16x128xi1>, vector<16x128xf32>
    %cst_12 = arith.constant 1.000000e+01 : f32
    %45 = vector.broadcast %cst_12 : f32 to vector<16x128xf32>
    %46 = arith.cmpf oge, %2, %45 : vector<16x128xf32>
    %cst_13 = arith.constant 1.100000e+01 : f32
    %47 = vector.broadcast %cst_13 : f32 to vector<16x128xf32>
    %48 = arith.cmpf oge, %2, %47 : vector<16x128xf32>
    %c11 = arith.constant 11 : index
    %49 = memref.load %arg1[%c11] : memref<17xf32, #tpu.memory_space<smem>>
    %c12_14 = arith.constant 12 : index
    %50 = memref.load %arg2[%c12_14] : memref<17xf32, #tpu.memory_space<smem>>
    %c10 = arith.constant 10 : index
    %51 = memref.load %arg1[%c10] : memref<17xf32, #tpu.memory_space<smem>>
    %c11_15 = arith.constant 11 : index
    %52 = memref.load %arg2[%c11_15] : memref<17xf32, #tpu.memory_space<smem>>
    %53 = vector.broadcast %49 : f32 to vector<16x128xf32>
    %54 = vector.broadcast %51 : f32 to vector<16x128xf32>
    %55 = arith.select %48, %53, %54 : vector<16x128xi1>, vector<16x128xf32>
    %56 = vector.broadcast %50 : f32 to vector<16x128xf32>
    %57 = vector.broadcast %52 : f32 to vector<16x128xf32>
    %58 = arith.select %48, %56, %57 : vector<16x128xi1>, vector<16x128xf32>
    %cst_16 = arith.constant 9.000000e+00 : f32
    %59 = vector.broadcast %cst_16 : f32 to vector<16x128xf32>
    %60 = arith.cmpf oge, %2, %59 : vector<16x128xf32>
    %c9 = arith.constant 9 : index
    %61 = memref.load %arg1[%c9] : memref<17xf32, #tpu.memory_space<smem>>
    %c10_17 = arith.constant 10 : index
    %62 = memref.load %arg2[%c10_17] : memref<17xf32, #tpu.memory_space<smem>>
    %c8 = arith.constant 8 : index
    %63 = memref.load %arg1[%c8] : memref<17xf32, #tpu.memory_space<smem>>
    %c9_18 = arith.constant 9 : index
    %64 = memref.load %arg2[%c9_18] : memref<17xf32, #tpu.memory_space<smem>>
    %65 = vector.broadcast %61 : f32 to vector<16x128xf32>
    %66 = vector.broadcast %63 : f32 to vector<16x128xf32>
    %67 = arith.select %60, %65, %66 : vector<16x128xi1>, vector<16x128xf32>
    %68 = vector.broadcast %62 : f32 to vector<16x128xf32>
    %69 = vector.broadcast %64 : f32 to vector<16x128xf32>
    %70 = arith.select %60, %68, %69 : vector<16x128xi1>, vector<16x128xf32>
    %71 = arith.select %46, %55, %67 : vector<16x128xi1>, vector<16x128xf32>
    %72 = arith.select %46, %58, %70 : vector<16x128xi1>, vector<16x128xf32>
    %73 = arith.select %8, %43, %71 : vector<16x128xi1>, vector<16x128xf32>
    %74 = arith.select %8, %44, %72 : vector<16x128xi1>, vector<16x128xf32>
    %cst_19 = arith.constant 4.000000e+00 : f32
    %75 = vector.broadcast %cst_19 : f32 to vector<16x128xf32>
    %76 = arith.cmpf oge, %2, %75 : vector<16x128xf32>
    %cst_20 = arith.constant 6.000000e+00 : f32
    %77 = vector.broadcast %cst_20 : f32 to vector<16x128xf32>
    %78 = arith.cmpf oge, %2, %77 : vector<16x128xf32>
    %cst_21 = arith.constant 7.000000e+00 : f32
    %79 = vector.broadcast %cst_21 : f32 to vector<16x128xf32>
    %80 = arith.cmpf oge, %2, %79 : vector<16x128xf32>
    %c7 = arith.constant 7 : index
    %81 = memref.load %arg1[%c7] : memref<17xf32, #tpu.memory_space<smem>>
    %c8_22 = arith.constant 8 : index
    %82 = memref.load %arg2[%c8_22] : memref<17xf32, #tpu.memory_space<smem>>
    %c6 = arith.constant 6 : index
    %83 = memref.load %arg1[%c6] : memref<17xf32, #tpu.memory_space<smem>>
    %c7_23 = arith.constant 7 : index
    %84 = memref.load %arg2[%c7_23] : memref<17xf32, #tpu.memory_space<smem>>
    %85 = vector.broadcast %81 : f32 to vector<16x128xf32>
    %86 = vector.broadcast %83 : f32 to vector<16x128xf32>
    %87 = arith.select %80, %85, %86 : vector<16x128xi1>, vector<16x128xf32>
    %88 = vector.broadcast %82 : f32 to vector<16x128xf32>
    %89 = vector.broadcast %84 : f32 to vector<16x128xf32>
    %90 = arith.select %80, %88, %89 : vector<16x128xi1>, vector<16x128xf32>
    %cst_24 = arith.constant 5.000000e+00 : f32
    %91 = vector.broadcast %cst_24 : f32 to vector<16x128xf32>
    %92 = arith.cmpf oge, %2, %91 : vector<16x128xf32>
    %c5 = arith.constant 5 : index
    %93 = memref.load %arg1[%c5] : memref<17xf32, #tpu.memory_space<smem>>
    %c6_25 = arith.constant 6 : index
    %94 = memref.load %arg2[%c6_25] : memref<17xf32, #tpu.memory_space<smem>>
    %c4 = arith.constant 4 : index
    %95 = memref.load %arg1[%c4] : memref<17xf32, #tpu.memory_space<smem>>
    %c5_26 = arith.constant 5 : index
    %96 = memref.load %arg2[%c5_26] : memref<17xf32, #tpu.memory_space<smem>>
    %97 = vector.broadcast %93 : f32 to vector<16x128xf32>
    %98 = vector.broadcast %95 : f32 to vector<16x128xf32>
    %99 = arith.select %92, %97, %98 : vector<16x128xi1>, vector<16x128xf32>
    %100 = vector.broadcast %94 : f32 to vector<16x128xf32>
    %101 = vector.broadcast %96 : f32 to vector<16x128xf32>
    %102 = arith.select %92, %100, %101 : vector<16x128xi1>, vector<16x128xf32>
    %103 = arith.select %78, %87, %99 : vector<16x128xi1>, vector<16x128xf32>
    %104 = arith.select %78, %90, %102 : vector<16x128xi1>, vector<16x128xf32>
    %cst_27 = arith.constant 2.000000e+00 : f32
    %105 = vector.broadcast %cst_27 : f32 to vector<16x128xf32>
    %106 = arith.cmpf oge, %2, %105 : vector<16x128xf32>
    %cst_28 = arith.constant 3.000000e+00 : f32
    %107 = vector.broadcast %cst_28 : f32 to vector<16x128xf32>
    %108 = arith.cmpf oge, %2, %107 : vector<16x128xf32>
    %c3 = arith.constant 3 : index
    %109 = memref.load %arg1[%c3] : memref<17xf32, #tpu.memory_space<smem>>
    %c4_29 = arith.constant 4 : index
    %110 = memref.load %arg2[%c4_29] : memref<17xf32, #tpu.memory_space<smem>>
    %c2 = arith.constant 2 : index
    %111 = memref.load %arg1[%c2] : memref<17xf32, #tpu.memory_space<smem>>
    %c3_30 = arith.constant 3 : index
    %112 = memref.load %arg2[%c3_30] : memref<17xf32, #tpu.memory_space<smem>>
    %113 = vector.broadcast %109 : f32 to vector<16x128xf32>
    %114 = vector.broadcast %111 : f32 to vector<16x128xf32>
    %115 = arith.select %108, %113, %114 : vector<16x128xi1>, vector<16x128xf32>
    %116 = vector.broadcast %110 : f32 to vector<16x128xf32>
    %117 = vector.broadcast %112 : f32 to vector<16x128xf32>
    %118 = arith.select %108, %116, %117 : vector<16x128xi1>, vector<16x128xf32>
    %cst_31 = arith.constant 1.000000e+00 : f32
    %119 = vector.broadcast %cst_31 : f32 to vector<16x128xf32>
    %120 = arith.cmpf oge, %2, %119 : vector<16x128xf32>
    %c1 = arith.constant 1 : index
    %121 = memref.load %arg1[%c1] : memref<17xf32, #tpu.memory_space<smem>>
    %c2_32 = arith.constant 2 : index
    %122 = memref.load %arg2[%c2_32] : memref<17xf32, #tpu.memory_space<smem>>
    %c0_33 = arith.constant 0 : index
    %123 = memref.load %arg1[%c0_33] : memref<17xf32, #tpu.memory_space<smem>>
    %c1_34 = arith.constant 1 : index
    %124 = memref.load %arg2[%c1_34] : memref<17xf32, #tpu.memory_space<smem>>
    %125 = vector.broadcast %121 : f32 to vector<16x128xf32>
    %126 = vector.broadcast %123 : f32 to vector<16x128xf32>
    %127 = arith.select %120, %125, %126 : vector<16x128xi1>, vector<16x128xf32>
    %128 = vector.broadcast %122 : f32 to vector<16x128xf32>
    %129 = vector.broadcast %124 : f32 to vector<16x128xf32>
    %130 = arith.select %120, %128, %129 : vector<16x128xi1>, vector<16x128xf32>
    %131 = arith.select %106, %115, %127 : vector<16x128xi1>, vector<16x128xf32>
    %132 = arith.select %106, %118, %130 : vector<16x128xi1>, vector<16x128xf32>
    %133 = arith.select %76, %103, %131 : vector<16x128xi1>, vector<16x128xf32>
    %134 = arith.select %76, %104, %132 : vector<16x128xi1>, vector<16x128xf32>
    %135 = arith.select %6, %73, %133 : vector<16x128xi1>, vector<16x128xf32>
    %136 = arith.select %6, %74, %134 : vector<16x128xi1>, vector<16x128xf32>
    %137 = arith.mulf %4, %136 : vector<16x128xf32>
    %138 = arith.addf %135, %137 : vector<16x128xf32>
    %c0_35 = arith.constant 0 : index
    %c0_36 = arith.constant 0 : index
    %139 = vector.load %arg4[%c0_35, %c0_36] : memref<16x128xf32, #tpu.memory_space<vmem>>, vector<16x128xf32>
    tpu.vector_store %arg4[%c0_35, %c0_36], %138 {strides = array<i32>} : memref<16x128xf32, #tpu.memory_space<vmem>>, vector<16x128xf32>,
    return
  }
  func.func @transform_0(%arg0: i32) -> i32 {
    %c0_i32 = arith.constant 0 : i32
    %c0_i32_0 = arith.constant 0 : i32
    return %c0_i32 : i32
  }
  func.func @transform_1(%arg0: i32) -> i32 {
    %c0_i32 = arith.constant 0 : i32
    %c0_i32_0 = arith.constant 0 : i32
    return %c0_i32 : i32
  }
  func.func @transform_2(%arg0: i32) -> (i32, i32) {
    %c0_i32 = arith.constant 0 : i32
    %c0_i32_0 = arith.constant 0 : i32
    return %arg0, %c0_i32 : i32, i32
  }
  func.func @transform_3(%arg0: i32) -> (i32, i32) {
    %c0_i32 = arith.constant 0 : i32
    %c0_i32_0 = arith.constant 0 : i32
    return %arg0, %c0_i32 : i32, i32
  }
}

</mosaic_0001>

<llo_original>
// kernel: tpu_custom_call.1
$region0: #{tpu_custom_call.1}
  #allocation0 [shape = 'u32[]', space=smem, size = 0x4, offset = 0x4, fixed_abs, tag = 'smem constant byte address 0x4 - core index']
  #allocation1 [shape = 'u32[144,128]{1,0:T(1,128)}', space=vmem, size = 0x12000, scoped, tag = 'internal scratch']
  %s0 = inlined_call_operand.hbm [shape: f32[17], index: 0, kind: input, shape index: {}]
  %s1 = inlined_call_operand.vmem [shape: f32[17], index: 1, kind: input, shape index: {}]
  %s2 = inlined_call_operand.hbm [shape: f32[16,128], index: 2, kind: input, shape index: {}]
  %s3 = inlined_call_operand.hbm [shape: f32[16,128], index: 3, kind: output, shape index: {}]
  %s4 = sld [smem:[#allocation0]]
  $region34: #{tpu_custom_call.1} parent=0
    _
  %s6 = ssub.s32 1, %s4
  %s7 = scalar_select 0, %s6, %s4
  $region1: #{tpu_custom_call.1} parent=0
    #allocation2 [shape = 'u8[512]{0}', space=smem, size = 0x200, scoped, tag = 'input window, operand 0, single buffered']
    #allocation3 [shape = 's32[1]{0}', space=sflag, size = 0x4, scoped, tag = 'scoped memory for tpu_custom_call.1']
    #allocation4 [shape = 's32[1]{0}', space=sflag, size = 0x4, scoped, tag = 'scoped memory for tpu_custom_call.1']
    #allocation5 [shape = 's32[1]{0}', space=sflag, size = 0x4, scoped, tag = 'scoped memory for tpu_custom_call.1']
    #allocation6 [shape = 's32[1]{0}', space=sflag, size = 0x4, scoped, tag = 'scoped memory for tpu_custom_call.1']
    #allocation7 [shape = 'u8[512]{0}', space=smem, size = 0x200, scoped, tag = 'input window, operand 1, single buffered']
    #allocation8 [shape = 'u8[8192]{0}', space=vmem, size = 0x2000, scoped, tag = 'input window, operand 2, single buffered']
    #allocation9 [shape = 'u8[8192]{0}', space=vmem, size = 0x2000, scoped, tag = 'output window, operand 0, single buffered']
    %8 = vsyncpa [#allocation5], 0
    %9 = vsyncpa [#allocation6], 0
    %10 = vsyncpa [#allocation3], 0
    %11 = vsyncpa [#allocation4], 0
    // Predicated region
    $region2: #{tpu_custom_call.1} parent=1 // pred_check
      _
    $region3: #{tpu_custom_call.1} parent=1 // pred_check_branch
      %13 = sbr.rel (0) target = $region5
    $region4: #{tpu_custom_call.1} parent=1 // pred_region
      %s15 = ssub.s32 16, 16
      %16 = vsyncadd [#allocation5], %s15
      %19 = dma.hbm_to_smem %s0, 16, [#allocation2], [#allocation5]
    $region5: #{tpu_custom_call.1} parent=1 // pred_fallthru
      _
    // Predicated region
    $region6: #{tpu_custom_call.1} parent=1 // pred_check
      _
    $region7: #{tpu_custom_call.1} parent=1 // pred_check_branch
      %21 = sbr.rel (0) target = $region9
    $region8: #{tpu_custom_call.1} parent=1 // pred_region
      %s23 = ssub.s32 16, 16
      %24 = vsyncadd [#allocation6], %s23
      %s26 = sshll.u32 %s1, 4
      %s27 = int_to_ptr.vmem [resolvable:$true] %s26
      %29 = dma.vmem_to_smem %s27, 16, [#allocation7], [#allocation6]
    $region9: #{tpu_custom_call.1} parent=1 // pred_fallthru
      _
    // Predicated region
    $region10: #{tpu_custom_call.1} parent=1 // pred_check
      _
    $region11: #{tpu_custom_call.1} parent=1 // pred_check_branch
      %31 = sbr.rel (0) target = $region13
    $region12: #{tpu_custom_call.1} parent=1 // pred_region
      %s33 = ssub.s32 256, 256
      %34 = vsyncadd [#allocation3], %s33
      %s35 = sshll.u32 [#allocation8], 4
      %s36 = int_to_ptr.vmem [resolvable:$true] %s35
      %41 = dma.hbm_to_vmem [thread:$0]  %s2, 256, %s36, [#allocation3], 128, 128, 8
    $region13: #{tpu_custom_call.1} parent=1 // pred_fallthru
      _
    // Predicated region
    $region14: #{tpu_custom_call.1} parent=1 // pred_check
      _
    $region15: #{tpu_custom_call.1} parent=1 // pred_check_branch
      %43 = sbr.rel (0) target = $region17
    $region16: #{tpu_custom_call.1} parent=1 // pred_region
      %44 = dma.done [#allocation5], 16
    $region17: #{tpu_custom_call.1} parent=1 // pred_fallthru
      _
    // Predicated region
    $region18: #{tpu_custom_call.1} parent=1 // pred_check
      _
    $region19: #{tpu_custom_call.1} parent=1 // pred_check_branch
      %46 = sbr.rel (0) target = $region21
    $region20: #{tpu_custom_call.1} parent=1 // pred_region
      %47 = dma.done [#allocation6], 16
    $region21: #{tpu_custom_call.1} parent=1 // pred_fallthru
      _
    // Predicated region
    $region22: #{tpu_custom_call.1} parent=1 // pred_check
      _
    $region23: #{tpu_custom_call.1} parent=1 // pred_check_branch
      %49 = sbr.rel (0) target = $region25
    $region24: #{tpu_custom_call.1} parent=1 // pred_region
      %50 = dma.done [#allocation3], 256
    $region25: #{tpu_custom_call.1} parent=1 // pred_fallthru
      _
    %51 = sfence
    %v52 = vld [vmem:[#allocation8] sm:$0xff]
    %v53 = vld [vmem:[#allocation8 + $0x8] sm:$0xff]
    %v54 = vmul.f32 %v52, 16.0
    %v55 = vmul.f32 %v53, 16.0
    %v56 = vfloor.f32 %v54
    %v57 = vfloor.f32 %v55
    %v58 = vsub.f32 %v54, %v56
    %v59 = vsub.f32 %v55, %v57
    %vm60 = vcmp.ge.f32.partialorder %v54, 8.0
    %vm61 = vcmp.ge.f32.partialorder %v55, 8.0
    %vm62 = vcmp.ge.f32.partialorder %v54, 12.0
    %vm63 = vcmp.ge.f32.partialorder %v55, 12.0
    %vm64 = vcmp.ge.f32.partialorder %v54, 14.0
    %vm65 = vcmp.ge.f32.partialorder %v55, 14.0
    %vm66 = vcmp.ge.f32.partialorder %v54, 15.0
    %vm67 = vcmp.ge.f32.partialorder %v55, 15.0
    %vm68 = vcmp.ge.f32.partialorder %v54, 16.0
    %vm69 = vcmp.ge.f32.partialorder %v55, 16.0
    %s70 = sld [smem:[#allocation2 + $0x10]]
    %s71 = sld [smem:[#allocation7 + $0x10]]
    %s72 = sld [smem:[#allocation2 + $0xf]]
    %v73 = vstv %s70
    %v74 = vstv %s72
    %v75 = vsel %vm68, %v73, %v74
    %v76 = vsel %vm69, %v73, %v74
    %v77 = vstv %s71
    %s78 = sld [smem:[#allocation2 + $0xe]]
    %s79 = sld [smem:[#allocation7 + $0xf]]
    %v80 = vstv %s78
    %v81 = vsel %vm66, %v75, %v80
    %v82 = vsel %vm67, %v76, %v80
    %v83 = vstv %s79
    %v84 = vsel %vm66, %v77, %v83
    %v85 = vsel %vm67, %v77, %v83
    %vm86 = vcmp.ge.f32.partialorder %v54, 13.0
    %vm87 = vcmp.ge.f32.partialorder %v55, 13.0
    %s88 = sld [smem:[#allocation2 + $0xd]]
    %s89 = sld [smem:[#allocation7 + $0xe]]
    %s90 = sld [smem:[#allocation2 + $0xc]]
    %s91 = sld [smem:[#allocation7 + $0xd]]
    %v92 = vstv %s88
    %v93 = vstv %s90
    %v94 = vsel %vm86, %v92, %v93
    %v95 = vsel %vm87, %v92, %v93
    %v96 = vstv %s89
    %v97 = vstv %s91
    %v98 = vsel %vm86, %v96, %v97
    %v99 = vsel %vm87, %v96, %v97
    %v100 = vsel %vm64, %v81, %v94
    %v101 = vsel %vm65, %v82, %v95
    %v102 = vsel %vm64, %v84, %v98
    %v103 = vsel %vm65, %v85, %v99
    %vm104 = vcmp.ge.f32.partialorder %v54, 10.0
    %vm105 = vcmp.ge.f32.partialorder %v55, 10.0
    %vm106 = vcmp.ge.f32.partialorder %v54, 11.0
    %vm107 = vcmp.ge.f32.partialorder %v55, 11.0
    %s108 = sld [smem:[#allocation2 + $0xb]]
    %s109 = sld [smem:[#allocation7 + $0xc]]
    %s110 = sld [smem:[#allocation2 + $0xa]]
    %s111 = sld [smem:[#allocation7 + $0xb]]
    %v112 = vstv %s108
    %v113 = vstv %s110
    %v114 = vsel %vm106, %v112, %v113
    %v115 = vsel %vm107, %v112, %v113
    %v116 = vstv %s109
    %v117 = vstv %s111
    %v118 = vsel %vm106, %v116, %v117
    %v119 = vsel %vm107, %v116, %v117
    %vm120 = vcmp.ge.f32.partialorder %v54, 9.0
    %vm121 = vcmp.ge.f32.partialorder %v55, 9.0
    %s122 = sld [smem:[#allocation2 + $0x9]]
    %s123 = sld [smem:[#allocation7 + $0xa]]
    %s124 = sld [smem:[#allocation2 + $0x8]]
    %s125 = sld [smem:[#allocation7 + $0x9]]
    %v126 = vstv %s122
    %v127 = vstv %s124
    %v128 = vsel %vm120, %v126, %v127
    %v129 = vsel %vm121, %v126, %v127
    %v130 = vstv %s123
    %v131 = vstv %s125
    %v132 = vsel %vm120, %v130, %v131
    %v133 = vsel %vm121, %v130, %v131
    %v134 = vsel %vm104, %v114, %v128
    %v135 = vsel %vm105, %v115, %v129
    %v136 = vsel %vm104, %v118, %v132
    %v137 = vsel %vm105, %v119, %v133
    %v138 = vsel %vm62, %v100, %v134
    %v139 = vsel %vm63, %v101, %v135
    %v140 = vsel %vm62, %v102, %v136
    %v141 = vsel %vm63, %v103, %v137
    %vm142 = vcmp.ge.f32.partialorder %v54, 4.0
    %vm143 = vcmp.ge.f32.partialorder %v55, 4.0
    %vm144 = vcmp.ge.f32.partialorder %v54, 6.0
    %vm145 = vcmp.ge.f32.partialorder %v55, 6.0
    %vm146 = vcmp.ge.f32.partialorder %v54, 7.0
    %vm147 = vcmp.ge.f32.partialorder %v55, 7.0
    %s148 = sld [smem:[#allocation2 + $0x7]]
    %s149 = sld [smem:[#allocation7 + $0x8]]
    %s150 = sld [smem:[#allocation2 + $0x6]]
    %s151 = sld [smem:[#allocation7 + $0x7]]
    %v152 = vstv %s148
    %v153 = vstv %s150
    %v154 = vsel %vm146, %v152, %v153
    %v155 = vsel %vm147, %v152, %v153
    %v156 = vstv %s149
    %v157 = vstv %s151
    %v158 = vsel %vm146, %v156, %v157
    %v159 = vsel %vm147, %v156, %v157
    %vm160 = vcmp.ge.f32.partialorder %v54, 5.0
    %vm161 = vcmp.ge.f32.partialorder %v55, 5.0
    %s162 = sld [smem:[#allocation2 + $0x5]]
    %s163 = sld [smem:[#allocation7 + $0x6]]
    %s164 = sld [smem:[#allocation2 + $0x4]]
    %s165 = sld [smem:[#allocation7 + $0x5]]
    %v166 = vstv %s162
    %v167 = vstv %s164
    %v168 = vsel %vm160, %v166, %v167
    %v169 = vsel %vm161, %v166, %v167
    %v170 = vstv %s163
    %v171 = vstv %s165
    %v172 = vsel %vm160, %v170, %v171
    %v173 = vsel %vm161, %v170, %v171
    %v174 = vsel %vm144, %v154, %v168
    %v175 = vsel %vm145, %v155, %v169
    %v176 = vsel %vm144, %v158, %v172
    %v177 = vsel %vm145, %v159, %v173
    %vm178 = vcmp.ge.f32.partialorder %v54, 2.0
    %vm179 = vcmp.ge.f32.partialorder %v55, 2.0
    %vm180 = vcmp.ge.f32.partialorder %v54, 3.0
    %vm181 = vcmp.ge.f32.partialorder %v55, 3.0
    %s182 = sld [smem:[#allocation2 + $0x3]]
    %s183 = sld [smem:[#allocation7 + $0x4]]
    %s184 = sld [smem:[#allocation2 + $0x2]]
    %s185 = sld [smem:[#allocation7 + $0x3]]
    %v186 = vstv %s182
    %v187 = vstv %s184
    %v188 = vsel %vm180, %v186, %v187
    %v189 = vsel %vm181, %v186, %v187
    %v190 = vstv %s183
    %v191 = vstv %s185
    %v192 = vsel %vm180, %v190, %v191
    %v193 = vsel %vm181, %v190, %v191
    %vm194 = vcmp.ge.f32.partialorder %v54, 1.0
    %vm195 = vcmp.ge.f32.partialorder %v55, 1.0
    %s196 = sld [smem:[#allocation2 + $0x1]]
    %s197 = sld [smem:[#allocation7 + $0x2]]
    %s198 = sld [smem:[#allocation2]]
    %s199 = sld [smem:[#allocation7 + $0x1]]
    %v200 = vstv %s196
    %v201 = vstv %s198
    %v202 = vsel %vm194, %v200, %v201
    %v203 = vsel %vm195, %v200, %v201
    %v204 = vstv %s197
    %v205 = vstv %s199
    %v206 = vsel %vm194, %v204, %v205
    %v207 = vsel %vm195, %v204, %v205
    %v208 = vsel %vm178, %v188, %v202
    %v209 = vsel %vm179, %v189, %v203
    %v210 = vsel %vm178, %v192, %v206
    %v211 = vsel %vm179, %v193, %v207
    %v212 = vsel %vm142, %v174, %v208
    %v213 = vsel %vm143, %v175, %v209
    %v214 = vsel %vm142, %v176, %v210
    %v215 = vsel %vm143, %v177, %v211
    %v216 = vsel %vm60, %v138, %v212
    %v217 = vsel %vm61, %v139, %v213
    %v218 = vsel %vm60, %v140, %v214
    %v219 = vsel %vm61, %v141, %v215
    %v220 = vmul.f32 %v58, %v218
    %v221 = vmul.f32 %v59, %v219
    %v222 = vadd.f32 %v216, %v220
    %v223 = vadd.f32 %v217, %v221
    %224 = vst [vmem:[#allocation9] sm:$0xff] %v222
    %225 = vst [vmem:[#allocation9 + $0x8] sm:$0xff] %v223
    // Predicated region
    $region26: #{tpu_custom_call.1} parent=1 // pred_check
      _
    $region27: #{tpu_custom_call.1} parent=1 // pred_check_branch
      %227 = sbr.rel (0) target = $region29
    $region28: #{tpu_custom_call.1} parent=1 // pred_region
      %s229 = ssub.s32 256, 256
      %230 = vsyncadd [#allocation4], %s229
      %s231 = sshll.u32 [#allocation9], 4
      %s232 = int_to_ptr.vmem [resolvable:$true] %s231
      %237 = dma.vmem_to_hbm [thread:$0]  %s232, 256, %s3, [#allocation4], 128, 128, 8
    $region29: #{tpu_custom_call.1} parent=1 // pred_fallthru
      _
    // Predicated region
    $region30: #{tpu_custom_call.1} parent=1 // pred_check
      _
    $region31: #{tpu_custom_call.1} parent=1 // pred_check_branch
      %239 = sbr.rel (0) target = $region33
    $region32: #{tpu_custom_call.1} parent=1 // pred_region
      %240 = dma.done [#allocation4], 256
    $region33: #{tpu_custom_call.1} parent=1 // pred_fallthru
      _
    %241 = vsyncpa [#allocation3], 1
    %242 = vsyncpa [#allocation4], 1
    %243 = vsyncpa [#allocation5], 1
    %244 = vsyncpa [#allocation6], 1

</llo_original>
